<compile_context>
chip_gen: v6e
topology: v6e:2x2x1
jax: 0.10.0
libtpu: 0.0.40
codegen_flags: <defaults>
</compile_context>

<pallas_src>
import jax
import jax.numpy as jnp
from jax.experimental import pallas as pl
from jax.experimental.pallas import tpu as pltpu

_MIN_KERNEL_BYTES = 256 * 1024        # below this, fused XLA is faster
_TILE_BYTES = 4 * 1024 * 1024         # ~4 MiB per tile in the native dtype
_ROW_ALIGN = 32                       # covers (8,128) f32 and (16,128) bf16 tiling


def _swish_kernel(sp_ref, x_ref, o_ref):
    # sp_ref holds softplus(beta), precomputed in the wrapper (f32, SMEM).
    sp = sp_ref[0]
    x = x_ref[...].astype(jnp.float32)            # native dtype on the wire
    z = x * sp
    sig = pl.reciprocal(1.0 + jnp.exp(-z), approx=False)   # exact sigmoid
    o_ref[...] = ((x * sig) * jnp.float32(1.0 / 1.1)).astype(o_ref.dtype)


def _swish_xla(x, sp_scalar):
    """Plain-XLA path (small tensors / ragged tails)."""
    xf = x.astype(jnp.float32)
    return ((xf * jax.nn.sigmoid(xf * sp_scalar)) / 1.1).astype(x.dtype)


def _round_up(n, m):
    return (n + m - 1) // m * m


def swish(x, beta, *, force_kernel=False):
    """x: any-shape float array (NCHW here). beta: scalar or shape-(1,) param."""
    orig_shape = x.shape
    dtype = x.dtype
    total = x.size
    itemsize = jnp.dtype(dtype).itemsize

    # Hoist the scalar softplus(beta) out of the kernel. Robust to (1,) or 0-d.
    beta_scalar = jnp.reshape(beta, (-1,))[0].astype(jnp.float32)
    sp_scalar = jnp.logaddexp(jnp.float32(0.0), beta_scalar)

    # Small-tensor cutoff: pallas_call fixed overhead dominates; fused XLA wins.
    if total == 0 or (not force_kernel and total * itemsize < _MIN_KERNEL_BYTES):
        return _swish_xla(x, sp_scalar)

    x_flat = jnp.ravel(x)

    # Ragged handling: kernel on the largest 128-divisible prefix; the <128
    # element tail runs in plain XLA.  No pad / slice-back HBM passes.
    main_total = (total // 128) * 128
    if main_total == 0:
        return _swish_xla(x, sp_scalar)
    tail = total - main_total

    # Lane-dense layout: widest last dim (multiple of 128) dividing main_total.
    lanes = next(c for c in (1024, 512, 256, 128) if main_total % c == 0)
    rows = main_total // lanes
    x2d = (x_flat[:main_total] if tail else x_flat).reshape(rows, lanes)

    # ~4 MiB tiles: 2 input + 2 output buffers = 16 MiB of VMEM, made legal on
    # every generation by the explicit vmem_limit_bytes below.
    tile_rows = max(_ROW_ALIGN,
                    (_TILE_BYTES // (lanes * itemsize)) // _ROW_ALIGN * _ROW_ALIGN)

    if rows <= tile_rows:
        if rows >= 2 * _ROW_ALIGN:
            # Mid-size tensor: split in two so v7x's 2 TensorCores both work.
            block_rows = _round_up(pl.cdiv(rows, 2), _ROW_ALIGN)
        else:
            block_rows = rows          # block == full array dims (tiny / forced)
    else:
        num_tiles = pl.cdiv(rows, tile_rows)
        num_tiles += num_tiles % 2     # even grid -> balanced across 2 TCs on v7x
        block_rows = _round_up(pl.cdiv(rows, num_tiles), _ROW_ALIGN)
    grid = (pl.cdiv(rows, block_rows),)

    out2d = pl.pallas_call(
        _swish_kernel,
        out_shape=jax.ShapeDtypeStruct((rows, lanes), dtype),
        grid=grid,
        in_specs=[
            pl.BlockSpec(memory_space=pltpu.SMEM),                # softplus(beta)
            pl.BlockSpec((block_rows, lanes), lambda i: (i, 0)),  # x row tile
        ],
        out_specs=pl.BlockSpec((block_rows, lanes), lambda i: (i, 0)),
        input_output_aliases={1: 0},   # reuse x2d's HBM buffer for the output
        cost_estimate=pl.CostEstimate(
            flops=8 * main_total,
            transcendentals=main_total,
            bytes_accessed=2 * main_total * itemsize,
        ),
        compiler_params=pltpu.CompilerParams(
            dimension_semantics=("parallel",),     # shard rows across v7x's 2 TCs
            vmem_limit_bytes=32 * 1024 * 1024,     # 16 MiB of buffers + headroom
        ),
    )(jnp.reshape(sp_scalar, (1,)), x2d)

    out_flat = out2d.reshape(-1)
    if tail:
        out_flat = jnp.concatenate(
            [out_flat, _swish_xla(x_flat[main_total:], sp_scalar)])
    return out_flat.reshape(orig_shape)


def _reference(x, beta):
    sp = jnp.logaddexp(jnp.float32(0.0), beta.reshape(-1)[0].astype(jnp.float32))
    xf = x.astype(jnp.float32)
    return ((xf * jax.nn.sigmoid(xf * sp)) / 1.1).astype(x.dtype)


if __name__ == "__main__":
    key = jax.random.PRNGKey(0)
    beta = jnp.array([0.5], dtype=jnp.float32)   # deterministic init, as in __init__

    # 1) Module-sized input (2,4,16,16); force the Pallas kernel path so it is
    #    exercised even though the wrapper's small-size cutoff would pick XLA.
    x_small = jax.random.normal(key, (2, 4, 16, 16), dtype=jnp.float32)  # NCHW
    y_small = swish(x_small, beta, force_kernel=True)
    jax.block_until_ready(y_small)
    assert y_small.shape == x_small.shape and y_small.dtype == x_small.dtype
    assert jnp.allclose(y_small, _reference(x_small, beta), atol=3e-6, rtol=3e-6)

    # Default path at this size goes through the fused-XLA cutoff.
    y_small_xla = swish(x_small, beta)
    assert jnp.allclose(y_small_xla, _reference(x_small, beta), atol=3e-6, rtol=3e-6)

    # 2) Medium activation: exercises the 2-block "split for both TCs" path.
    x_med = jax.random.normal(key, (8, 32, 64, 64), dtype=jnp.float32)
    y_med = swish(x_med, beta)
    jax.block_until_ready(y_med)
    assert jnp.allclose(y_med, _reference(x_med, beta), atol=3e-6, rtol=3e-6)

    # 3) Large activation: exercises the rows > tile_rows (even-grid) path.
    x_big = jax.random.normal(key, (16, 64, 64, 64), dtype=jnp.float32)
    y_big = swish(x_big, beta)
    jax.block_until_ready(y_big)
    assert jnp.allclose(y_big, _reference(x_big, beta), atol=3e-6, rtol=3e-6)

    # 4) Ragged size: kernel prefix + XLA tail (forced through the kernel path).
    x_rag = jax.random.normal(key, (3, 5, 7, 11), dtype=jnp.float32)
    y_rag = swish(x_rag, beta, force_kernel=True)
    jax.block_until_ready(y_rag)
    assert y_rag.shape == x_rag.shape and y_rag.dtype == x_rag.dtype
    assert jnp.allclose(y_rag, _reference(x_rag, beta), atol=3e-6, rtol=3e-6)

    print("KERNEL_OK")
</pallas_src>

<mosaic_0001>
module attributes {stable_mosaic.version = 11 : i64} {
  func.func @_swish_kernel(%arg0: i32, %arg1: memref<1xf32, #tpu.memory_space<smem>>, %arg2: memref<2x1024xf32, #tpu.memory_space<vmem>>, %arg3: memref<2x1024xf32, #tpu.memory_space<vmem>>) attributes {dimension_semantics = [#tpu.dimension_semantics<parallel>], iteration_bounds = array<i64: 1>, scalar_prefetch = 0 : i64, scratch_operands = 0 : i64, tpu.core_type = #tpu.core_type<tc>, window_params = [{transform_indices = @transform_0, window_bounds = array<i64: 1>}, {transform_indices = @transform_1, window_bounds = array<i64: 2, 1024>}, {transform_indices = @transform_2, window_bounds = array<i64: 2, 1024>}]} {
    %c0 = arith.constant 0 : index
    %0 = memref.load %arg1[%c0] : memref<1xf32, #tpu.memory_space<smem>>
    %c0_0 = arith.constant 0 : index
    %c0_1 = arith.constant 0 : index
    %1 = vector.load %arg2[%c0_0, %c0_1] : memref<2x1024xf32, #tpu.memory_space<vmem>>, vector<2x1024xf32>
    %2 = vector.broadcast %0 : f32 to vector<2x1024xf32>
    %3 = arith.mulf %1, %2 : vector<2x1024xf32>
    %cst = arith.constant 0.000000e+00 : f32
    %4 = vector.broadcast %cst : f32 to vector<2x1024xf32>
    %5 = arith.subf %4, %3 : vector<2x1024xf32>
    %6 = math.exp %5 : vector<2x1024xf32>
    %cst_2 = arith.constant 1.000000e+00 : f32
    %7 = vector.broadcast %cst_2 : f32 to vector<2x1024xf32>
    %8 = arith.addf %7, %6 : vector<2x1024xf32>
    %9 = tpu.reciprocal %8 : vector<2x1024xf32> -> vector<2x1024xf32>
    %10 = arith.mulf %1, %9 : vector<2x1024xf32>
    %cst_3 = arith.constant 0.909090936 : f32
    %11 = vector.broadcast %cst_3 : f32 to vector<2x1024xf32>
    %12 = arith.mulf %10, %11 : vector<2x1024xf32>
    %c0_4 = arith.constant 0 : index
    %c0_5 = arith.constant 0 : index
    %13 = vector.load %arg3[%c0_4, %c0_5] : memref<2x1024xf32, #tpu.memory_space<vmem>>, vector<2x1024xf32>
    tpu.vector_store %arg3[%c0_4, %c0_5], %12 {strides = array<i32>} : memref<2x1024xf32, #tpu.memory_space<vmem>>, vector<2x1024xf32>,
    return
  }
  func.func @transform_0(%arg0: i32) -> i32 {
    %c0_i32 = arith.constant 0 : i32
    %c0_i32_0 = arith.constant 0 : i32
    return %c0_i32 : i32
  }
  func.func @transform_1(%arg0: i32) -> (i32, i32) {
    %c0_i32 = arith.constant 0 : i32
    %c0_i32_0 = arith.constant 0 : i32
    return %arg0, %c0_i32 : i32, i32
  }
  func.func @transform_2(%arg0: i32) -> (i32, i32) {
    %c0_i32 = arith.constant 0 : i32
    %c0_i32_0 = arith.constant 0 : i32
    return %arg0, %c0_i32 : i32, i32
  }
}

</mosaic_0001>

<llo_original>
// kernel: tpu_custom_call.1
$region0: #{tpu_custom_call.1}
  #allocation0 [shape = 'u32[]', space=smem, size = 0x4, offset = 0x4, fixed_abs, tag = 'smem constant byte address 0x4 - core index']
  #allocation1 [shape = 'u32[144,128]{1,0:T(1,128)}', space=vmem, size = 0x12000, scoped, tag = 'internal scratch']
  #allocation2 [shape = 'f32[1]{0:T(128)S(6)}', space=smem, size = 0x200, scoped, tag = 'scoped memory for tpu_custom_call.1']
  %s0 = inlined_call_operand.<no memory space> [shape: f32[1], index: 0, kind: input, shape index: {}]
  %s1 = inlined_call_operand.hbm [shape: f32[2,1024], index: 1, kind: input, shape index: {}, may-alias: {1,2}]
  %s2 = inlined_call_operand.hbm [shape: f32[2,1024], index: 2, kind: output, shape index: {}, may-alias: {1,2}]
  %s3 = sld [smem:[#allocation0]]
  $region22: #{tpu_custom_call.1} parent=0
    _
  %s5 = ssub.s32 1, %s3
  %s6 = scalar_select 0, %s5, %s3
  %7 = sst [smem:[#allocation2]] %s0
  $region1: #{tpu_custom_call.1} parent=0
    #allocation3 [shape = 'u8[8192]{0}', space=vmem, size = 0x2000, scoped, tag = 'input window, operand 1, single buffered']
    #allocation4 [shape = 's32[1]{0}', space=sflag, size = 0x4, scoped, tag = 'scoped memory for tpu_custom_call.1']
    #allocation5 [shape = 's32[1]{0}', space=sflag, size = 0x4, scoped, tag = 'scoped memory for tpu_custom_call.1']
    #allocation6 [shape = 'u8[8192]{0}', space=vmem, size = 0x2000, scoped, tag = 'output window, operand 0, single buffered']
    %8 = vsyncpa [#allocation4], 0
    %9 = vsyncpa [#allocation5], 0
    // Predicated region
    $region2: #{tpu_custom_call.1} parent=1 // pred_check
      _
    $region3: #{tpu_custom_call.1} parent=1 // pred_check_branch
      %11 = sbr.rel (0) target = $region5
    $region4: #{tpu_custom_call.1} parent=1 // pred_region
      _
    $region5: #{tpu_custom_call.1} parent=1 // pred_fallthru
      _
    // Predicated region
    $region6: #{tpu_custom_call.1} parent=1 // pred_check
      _
    $region7: #{tpu_custom_call.1} parent=1 // pred_check_branch
      %13 = sbr.rel (0) target = $region9
    $region8: #{tpu_custom_call.1} parent=1 // pred_region
      %s15 = ssub.s32 256, 256
      %16 = vsyncadd [#allocation4], %s15
      %s18 = sshll.u32 [#allocation3], 4
      %s19 = int_to_ptr.vmem [resolvable:$true] %s18
      %21 = dma.hbm_to_vmem [thread:$0]  %s1, 256, %s19, [#allocation4]
    $region9: #{tpu_custom_call.1} parent=1 // pred_fallthru
      _
    // Predicated region
    $region10: #{tpu_custom_call.1} parent=1 // pred_check
      _
    $region11: #{tpu_custom_call.1} parent=1 // pred_check_branch
      %23 = sbr.rel (0) target = $region13
    $region12: #{tpu_custom_call.1} parent=1 // pred_region
      %24 = dma.done [#allocation4], 256
    $region13: #{tpu_custom_call.1} parent=1 // pred_fallthru
      _
    %s25 = sld [smem:[#allocation2]]
    %v26 = vld [vmem:[#allocation3] sm:$0xff]
    %v27 = vld [vmem:[#allocation3 + $0x8] sm:$0xff]
    %v28 = vstv %s25
    %v29 = vmul.f32 %v26, %v28
    %v30 = vmul.f32 %v27, %v28
    %v31 = vsub.f32 0.0, %v29
    %v32 = vsub.f32 0.0, %v30
    %v33 = vmul.f32 %v31, 1.442695
    %v34 = vpow.pop %v33
    %v35 = vmul.f32 %v32, 1.442695
    %v36 = vpow.pop %v35
    %v37 = vadd.f32 %v34, 1.0
    %v38 = vadd.f32 %v36, 1.0
    %v39 = vrcp.pop %v37
    %v40 = vrcp.pop %v38
    %v41 = vmul.f32 %v26, %v39
    %v42 = vmul.f32 %v27, %v40
    %v43 = vmul.f32 %v41, 0.90909094
    %v44 = vmul.f32 %v42, 0.90909094
    %45 = vst [vmem:[#allocation6] sm:$0xff] %v43
    %46 = vst [vmem:[#allocation6 + $0x8] sm:$0xff] %v44
    // Predicated region
    $region14: #{tpu_custom_call.1} parent=1 // pred_check
      _
    $region15: #{tpu_custom_call.1} parent=1 // pred_check_branch
      %48 = sbr.rel (0) target = $region17
    $region16: #{tpu_custom_call.1} parent=1 // pred_region
      %s50 = ssub.s32 256, 256
      %51 = vsyncadd [#allocation5], %s50
      %s53 = sshll.u32 [#allocation6], 4
      %s54 = int_to_ptr.vmem [resolvable:$true] %s53
      %56 = dma.vmem_to_hbm [thread:$0]  %s54, 256, %s2, [#allocation5]
    $region17: #{tpu_custom_call.1} parent=1 // pred_fallthru
      _
    // Predicated region
    $region18: #{tpu_custom_call.1} parent=1 // pred_check
      _
    $region19: #{tpu_custom_call.1} parent=1 // pred_check_branch
      %58 = sbr.rel (0) target = $region21
    $region20: #{tpu_custom_call.1} parent=1 // pred_region
      %59 = dma.done [#allocation5], 256
    $region21: #{tpu_custom_call.1} parent=1 // pred_fallthru
      _
    %60 = vsyncpa [#allocation4], 1
    %61 = vsyncpa [#allocation5], 1

</llo_original>
